<compile_context>
chip_gen: v7x
topology: tpu7x:2x2x1
jax: 0.10.0
libtpu: 0.0.40
codegen_flags: <defaults>
</compile_context>

<pallas_src>
from typing import NamedTuple

import jax
import jax.numpy as jnp
from jax.experimental import pallas as pl
from jax.experimental.pallas import tpu as pltpu


def _round_up(x, m):
    return (x + m - 1) // m * m


def _route_combine_kernel(x_ref, wt_ref, b_ref, we_ref, o_ref):
    # x_ref:  (Bt, C)   pooled per-sample features
    # wt_ref: (C, Ep)   routing fc weight, transposed + expert-padded
    # b_ref:  (1, Ep)   routing fc bias, expert-padded
    # we_ref: (Ep, Kp)  flattened expert conv weights, expert/Kflat-padded
    # o_ref:  (Bt, Kp)  per-sample combined conv kernels (flat)
    x = x_ref[...].astype(jnp.float32)
    wt = wt_ref[...].astype(jnp.float32)
    logits = jnp.dot(x, wt, preferred_element_type=jnp.float32)
    logits = logits + b_ref[...].astype(jnp.float32)
    # sigmoid on the EUP; padded expert columns give 0.5 but multiply all-zero
    # expert rows below, so they contribute nothing.
    routing = jax.nn.sigmoid(logits)                       # (Bt, Ep) f32
    we = we_ref[...].astype(jnp.float32)
    combined = jnp.dot(routing, we, preferred_element_type=jnp.float32)
    o_ref[...] = combined.astype(o_ref.dtype)


class CondConvParams(NamedTuple):
    wt: jax.Array           # (C, Ep)
    b2: jax.Array           # (1, Ep)
    we: jax.Array           # (Ep, Kp)
    num_experts: int
    in_channels: int
    kernel_shape: tuple     # (Cout, Cin // groups, kh, kw)
    kflat: int              # Cout * (Cin // groups) * kh * kw (unpadded)


def prepare_condconv_params(fc_weight, fc_bias, expert_weight):
    """One-time parameter repacking (hoisted out of the per-call path).

    fc_weight:     (E, C)   PyTorch nn.Linear weight of the routing fc.
    fc_bias:       (E,)     routing fc bias.
    expert_weight: (E, Cout, Cin//groups, kh, kw) CondConv expert weights.
    """
    E, C = fc_weight.shape
    assert fc_bias.shape == (E,)
    Ew, Cout, Cin_g, kh, kw = expert_weight.shape
    assert Ew == E
    Kf = Cout * Cin_g * kh * kw
    Ep = _round_up(E, 8)           # sublane-aligned expert dim (internal only)
    Kp = _round_up(Kf, 128)        # lane-dense output stores

    wt = jnp.zeros((C, Ep), fc_weight.dtype).at[:, :E].set(fc_weight.T)
    b2 = jnp.zeros((1, Ep), fc_bias.dtype).at[:, :E].set(fc_bias)
    we = jnp.zeros((Ep, Kp), expert_weight.dtype).at[:E, :Kf].set(
        expert_weight.reshape(E, Kf))
    return CondConvParams(wt, b2, we, E, C, (Cout, Cin_g, kh, kw), Kf)


def condconv_routing_combine(x_pooled, params: CondConvParams, *,
                             batch_tile=512, training=False):
    """sigmoid(dropout(x) @ Wfc^T + b) @ expert_weights, batched over samples.

    x_pooled: (B, C) stack of flattened pooled per-sample inputs (row i is
              torch.flatten of the (1, C, 1, 1) pooled map of sample i).
    Returns (B, Cout, Cin//groups, kh, kw) per-sample combined conv kernels.
    Dropout is identity (eval mode).
    """
    if training:
        raise NotImplementedError("training-mode dropout is not implemented")
    assert x_pooled.ndim == 2, "pass a (B, C) stack of pooled per-sample inputs"
    B, C = x_pooled.shape
    assert C == params.in_channels
    Ep = params.wt.shape[1]
    Kp = params.we.shape[1]
    Kf = params.kflat
    Cout, Cin_g, kh, kw = params.kernel_shape

    if B <= batch_tile:
        n_tiles = 1
        tile = _round_up(B, 8)
    else:
        n_tiles = pl.cdiv(B, batch_tile)
        n_tiles += n_tiles % 2                   # even step count -> both v7x TCs busy
        tile = _round_up(pl.cdiv(B, n_tiles), 8)  # last tile not mostly zeros

    Bp = n_tiles * tile
    xp = x_pooled if Bp == B else jnp.pad(x_pooled, ((0, Bp - B), (0, 0)))
    out_shape = jax.ShapeDtypeStruct((Bp, Kp), jnp.float32)

    if n_tiles == 1:
        # Whole problem in one block: no grid, no pipeline machinery.
        out = pl.pallas_call(
            _route_combine_kernel,
            out_shape=out_shape,
            in_specs=[pl.BlockSpec(memory_space=pltpu.MemorySpace.VMEM)] * 4,
            out_specs=pl.BlockSpec(memory_space=pltpu.MemorySpace.VMEM),
        )(xp, params.wt, params.b2, params.we)
    else:
        out = pl.pallas_call(
            _route_combine_kernel,
            out_shape=out_shape,
            grid=(n_tiles,),
            in_specs=[
                pl.BlockSpec((tile, C), lambda i: (i, 0)),
                pl.BlockSpec((C, Ep), lambda i: (0, 0)),
                pl.BlockSpec((1, Ep), lambda i: (0, 0)),
                pl.BlockSpec((Ep, Kp), lambda i: (0, 0)),
            ],
            out_specs=pl.BlockSpec((tile, Kp), lambda i: (i, 0)),
            compiler_params=pltpu.CompilerParams(
                dimension_semantics=("parallel",)),
        )(xp, params.wt, params.b2, params.we)

    if Bp != B or Kp != Kf:
        out = out[:B, :Kf]
    return out.reshape(B, Cout, Cin_g, kh, kw)


if __name__ == "__main__":
    key = jax.random.PRNGKey(0)
    keys = iter(jax.random.split(key, 10))

    # DFA_Decoder CondConv2D: in=48 -> out=64 (decode_channels), 1x1, 3 experts.
    C, Cout, ksz, E = 48, 64, 1, 3
    B, H, W = 8, 4, 4

    x = jax.random.normal(next(keys), (B, C, H, W), jnp.float32)
    bound = 1.0 / jnp.sqrt(jnp.float32(C))
    fc_w = jax.random.uniform(next(keys), (E, C), minval=-bound, maxval=bound)
    fc_b = jax.random.uniform(next(keys), (E,), minval=-bound, maxval=bound)
    expert_w = 0.1 * jax.random.normal(next(keys), (E, Cout, C, ksz, ksz),
                                       jnp.float32)

    # One-time parameter repacking (hoisted out of the per-call path).
    params = prepare_condconv_params(fc_w, fc_b, expert_w)

    # adaptive_avg_pool2d(x, (1,1)) + flatten (done per-sample in PyTorch).
    x_pooled = x.mean(axis=(2, 3))                               # (B, C)

    # Reference (dropout = identity in eval mode).
    routing_ref = jax.nn.sigmoid(x_pooled @ fc_w.T + fc_b)       # (B, E)
    kernels_ref = jnp.einsum("be,eoihw->boihw", routing_ref, expert_w)

    out = jax.block_until_ready(condconv_routing_combine(x_pooled, params))
    assert out.shape == (B, Cout, C, ksz, ksz)
    assert jnp.allclose(out, kernels_ref, atol=1e-5, rtol=1e-4)

    # Non-multiple-of-8 batch: exercises row padding + slice-off path.
    out5 = jax.block_until_ready(condconv_routing_combine(x_pooled[:5], params))
    assert jnp.allclose(out5, kernels_ref[:5], atol=1e-5, rtol=1e-4)

    # Large batch: even-step batch-tiled grid path (both v7x TCs busy).
    xb = jnp.tile(x_pooled, (64, 1))                             # (512, C)
    outb = jax.block_until_ready(
        condconv_routing_combine(xb, params, batch_tile=128))
    assert outb.shape == (512, Cout, C, ksz, ksz)
    assert jnp.allclose(outb, jnp.tile(kernels_ref, (64, 1, 1, 1, 1)),
                        atol=1e-5, rtol=1e-4)

    # DFA_Encoder conv1 CondConv2D (3 -> 8, 3x3): exercises Kflat->128 padding.
    C2, Cout2, k2 = 3, 8, 3
    fc_w2 = 0.5 * jax.random.uniform(next(keys), (E, C2), minval=-1.0, maxval=1.0)
    fc_b2 = jax.random.uniform(next(keys), (E,), minval=-0.5, maxval=0.5)
    ew2 = 0.1 * jax.random.normal(next(keys), (E, Cout2, C2, k2, k2), jnp.float32)
    params2 = prepare_condconv_params(fc_w2, fc_b2, ew2)
    xp2 = jax.random.normal(next(keys), (B, C2), jnp.float32)
    ref2 = jnp.einsum("be,eoihw->boihw",
                      jax.nn.sigmoid(xp2 @ fc_w2.T + fc_b2), ew2)
    out2 = jax.block_until_ready(condconv_routing_combine(xp2, params2))
    assert out2.shape == (B, Cout2, C2, k2, k2)
    assert jnp.allclose(out2, ref2, atol=1e-5, rtol=1e-4)

    print("KERNEL_OK")
</pallas_src>

<mosaic_0001>
module attributes {stable_mosaic.version = 11 : i64} {
  func.func @_route_combine_kernel(%arg0: memref<8x48xf32, #tpu.memory_space<vmem>>, %arg1: memref<48x8xf32, #tpu.memory_space<vmem>>, %arg2: memref<1x8xf32, #tpu.memory_space<vmem>>, %arg3: memref<8x3072xf32, #tpu.memory_space<vmem>>, %arg4: memref<8x3072xf32, #tpu.memory_space<vmem>>) attributes {dimension_semantics = [], scalar_prefetch = 0 : i64, scratch_operands = 0 : i64, tpu.core_type = #tpu.core_type<tc>} {
    %c0 = arith.constant 0 : index
    %c0_0 = arith.constant 0 : index
    %0 = vector.load %arg0[%c0, %c0_0] : memref<8x48xf32, #tpu.memory_space<vmem>>, vector<8x48xf32>
    %c0_1 = arith.constant 0 : index
    %c0_2 = arith.constant 0 : index
    %1 = vector.load %arg1[%c0_1, %c0_2] : memref<48x8xf32, #tpu.memory_space<vmem>>, vector<48x8xf32>
    %cst = arith.constant dense<0.000000e+00> : vector<8x8xf32>
    %2 = tpu.matmul %0, %1, %cst {dimension_numbers = #tpu.dot_dimension_numbers<[1], [0], [0], [1], [0, 0, 1, 1], [], []>} : vector<8x48xf32>, vector<48x8xf32>, vector<8x8xf32> -> vector<8x8xf32>
    %c0_3 = arith.constant 0 : index
    %c0_4 = arith.constant 0 : index
    %3 = vector.load %arg2[%c0_3, %c0_4] : memref<1x8xf32, #tpu.memory_space<vmem>>, vector<1x8xf32>
    %4 = vector.broadcast %3 : vector<1x8xf32> to vector<8x8xf32>
    %5 = arith.addf %2, %4 : vector<8x8xf32>
    %6 = arith.negf %5 : vector<8x8xf32>
    %7 = math.exp %6 : vector<8x8xf32>
    %cst_5 = arith.constant 1.000000e+00 : f32
    %8 = vector.broadcast %cst_5 : f32 to vector<8x8xf32>
    %9 = arith.addf %8, %7 : vector<8x8xf32>
    %10 = arith.divf %8, %9 : vector<8x8xf32>
    %c0_6 = arith.constant 0 : index
    %c0_7 = arith.constant 0 : index
    %11 = vector.load %arg3[%c0_6, %c0_7] : memref<8x3072xf32, #tpu.memory_space<vmem>>, vector<8x3072xf32>
    %cst_8 = arith.constant dense<0.000000e+00> : vector<8x3072xf32>
    %12 = tpu.matmul %10, %11, %cst_8 {dimension_numbers = #tpu.dot_dimension_numbers<[1], [0], [0], [1], [0, 0, 1, 1], [], []>} : vector<8x8xf32>, vector<8x3072xf32>, vector<8x3072xf32> -> vector<8x3072xf32>
    %c0_9 = arith.constant 0 : index
    %c0_10 = arith.constant 0 : index
    %13 = vector.load %arg4[%c0_9, %c0_10] : memref<8x3072xf32, #tpu.memory_space<vmem>>, vector<8x3072xf32>
    tpu.vector_store %arg4[%c0_9, %c0_10], %12 {strides = array<i32>} : memref<8x3072xf32, #tpu.memory_space<vmem>>, vector<8x3072xf32>,
    return
  }
}

</mosaic_0001>

<llo_original>
// kernel: tpu_custom_call.1
$region0: #{tpu_custom_call.1}
  #allocation0 [shape = 'u32[]', space=smem, size = 0x4, offset = 0x4, fixed_abs, tag = 'smem constant byte address 0x4 - core index']
  #allocation1 [shape = 'u32[144,128]{1,0:T(1,128)}', space=vmem, size = 0x12000, scoped, tag = 'internal scratch']
  %s0 = inlined_call_operand.vmem [shape: f32[8,48], index: 0, kind: input, shape index: {}]
  %s1 = inlined_call_operand.vmem [shape: f32[48,8], index: 1, kind: input, shape index: {}]
  %s2 = inlined_call_operand.vmem [shape: f32[1,8], index: 2, kind: input, shape index: {}]
  %s3 = inlined_call_operand.hbm [shape: f32[8,3072], index: 3, kind: input, shape index: {}]
  %s4 = inlined_call_operand.hbm [shape: f32[8,3072], index: 4, kind: output, shape index: {}]
  %s5 = sld [smem:[#allocation0]]
  $region30: #{tpu_custom_call.1} parent=0
    _
  %s7 = ssub.s32 1, %s5
  %s8 = scalar_select 0, %s7, %s5
  $region1: #{tpu_custom_call.1} parent=0
    #allocation2 [shape = 'u8[98304]{0}', space=vmem, size = 0x18000, scoped, tag = 'input window, operand 3, single buffered']
    #allocation3 [shape = 's32[1]{0}', space=sflag, size = 0x4, scoped, tag = 'scoped memory for tpu_custom_call.1']
    #allocation4 [shape = 's32[1]{0}', space=sflag, size = 0x4, scoped, tag = 'scoped memory for tpu_custom_call.1']
    #allocation5 [shape = 'u8[98304]{0}', space=vmem, size = 0x18000, scoped, tag = 'output window, operand 0, single buffered']
    %9 = vsyncpa [#allocation3], 0
    %10 = vsyncpa [#allocation4], 0
    // Predicated region
    $region2: #{tpu_custom_call.1} parent=1 // pred_check
      _
    $region3: #{tpu_custom_call.1} parent=1 // pred_check_branch
      %12 = sbr.rel (0) target = $region5
    $region4: #{tpu_custom_call.1} parent=1 // pred_region
      _
    $region5: #{tpu_custom_call.1} parent=1 // pred_fallthru
      _
    // Predicated region
    $region6: #{tpu_custom_call.1} parent=1 // pred_check
      _
    $region7: #{tpu_custom_call.1} parent=1 // pred_check_branch
      %14 = sbr.rel (0) target = $region9
    $region8: #{tpu_custom_call.1} parent=1 // pred_region
      _
    $region9: #{tpu_custom_call.1} parent=1 // pred_fallthru
      _
    // Predicated region
    $region10: #{tpu_custom_call.1} parent=1 // pred_check
      _
    $region11: #{tpu_custom_call.1} parent=1 // pred_check_branch
      %16 = sbr.rel (0) target = $region13
    $region12: #{tpu_custom_call.1} parent=1 // pred_region
      _
    $region13: #{tpu_custom_call.1} parent=1 // pred_fallthru
      _
    // Predicated region
    $region14: #{tpu_custom_call.1} parent=1 // pred_check
      _
    $region15: #{tpu_custom_call.1} parent=1 // pred_check_branch
      %18 = sbr.rel (0) target = $region17
    $region16: #{tpu_custom_call.1} parent=1 // pred_region
      %s20 = ssub.s32 3072, 3072
      %21 = vsyncadd [#allocation3], %s20
      %s23 = sshll.u32 [#allocation2], 4
      %s24 = int_to_ptr.vmem [resolvable:$true] %s23
      %26 = dma.hbm_to_vmem [thread:$0]  %s3, 3072, %s24, [#allocation3]
    $region17: #{tpu_custom_call.1} parent=1 // pred_fallthru
      _
    // Predicated region
    $region18: #{tpu_custom_call.1} parent=1 // pred_check
      _
    $region19: #{tpu_custom_call.1} parent=1 // pred_check_branch
      %28 = sbr.rel (0) target = $region21
    $region20: #{tpu_custom_call.1} parent=1 // pred_region
      %29 = dma.done [#allocation3], 3072
    $region21: #{tpu_custom_call.1} parent=1 // pred_fallthru
      _
    %v30 = vld [vmem:[%s0] sm:$0xff]
    %v31 = vld [vmem:[%s1] sm:$0xff]
    %v32 = vld [vmem:[%s1 + $0x8] sm:$0xff]
    %v33 = vld [vmem:[%s1 + $0x10] sm:$0xff]
    %v34 = vld [vmem:[%s1 + $0x18] sm:$0xff]
    %v35 = vld [vmem:[%s1 + $0x20] sm:$0xff]
    %v36 = vld [vmem:[%s1 + $0x28] sm:$0xff]
    %v37 = vld [vmem:[%s2] sm:$0x1]
    %v39 = vlaneseq
    %v40 = vshrl.u32 %v39, 7
    %v41 = vsub.s32 0, %v40
    %v42 = vrot.slane %v37, %v41
    %vm44 = vcmask 392192
    %v46 = vsel %vm44, %v30, 0
    %48 = vmatprep.subr.mxu0 0.0
    %49 = vmatpush1.msra.mxu0 %v31
    %50 = vmatprep.subr.mxu0 0.0
    %51 = vmatpush1.msra.mxu0 %v32
    %52 = vmatprep.subr.mxu0 0.0
    %53 = vmatpush1.msra.mxu0 %v33
    %54 = vmatprep.subr.mxu0 0.0
    %55 = vmatpush1.msra.mxu0 %v34
    %56 = vmatprep.subr.mxu0 0.0
    %57 = vmatpush1.msra.mxu0 %v35
    %58 = vmatprep.subr.mxu0 0.0
    %59 = vmatpush1.msra.mxu0 %v36
    %60 = vmatprep.subr.mxu0 0.0
    %61 = vmatpush1.msra.mxu0 0.0
    %62 = vmatprep.subr.mxu0 0.0
    %63 = vmatpush1.msra.mxu0 0.0
    %64 = vmatprep.subr.mxu0 0.0
    %65 = vmatpush1.msra.mxu0 0.0
    %66 = vmatprep.subr.mxu0 0.0
    %67 = vmatpush1.msra.mxu0 0.0
    %68 = vmatprep.subr.mxu0 0.0
    %69 = vmatpush1.msra.mxu0 0.0
    %70 = vmatprep.subr.mxu0 0.0
    %71 = vmatpush1.msra.mxu0 0.0
    %72 = vmatprep.subr.mxu0 0.0
    %73 = vmatpush1.msra.mxu0 0.0
    %74 = vmatprep.subr.mxu0 0.0
    %75 = vmatpush1.msra.mxu0 0.0
    %76 = vmatprep.subr.mxu0 0.0
    %77 = vmatpush1.msra.mxu0 0.0
    %78 = vmatprep.subr.mxu0 0.0
    %79 = vmatpush1.msra.mxu0 0.0
    %80 = vmatprep.subr.mxu0 0.0
    %81 = vmatpush1.msra.mxu0 0.0
    %82 = vmatprep.subr.mxu0 0.0
    %83 = vmatpush1.msra.mxu0 0.0
    %84 = vmatprep.subr.mxu0 0.0
    %85 = vmatpush1.msra.mxu0 0.0
    %86 = vmatprep.subr.mxu0 0.0
    %87 = vmatpush1.msra.mxu0 0.0
    %88 = vmatprep.subr.mxu0 0.0
    %89 = vmatpush1.msra.mxu0 0.0
    %90 = vmatprep.subr.mxu0 0.0
    %91 = vmatpush1.msra.mxu0 0.0
    %92 = vmatprep.subr.mxu0 0.0
    %93 = vmatpush1.msra.mxu0 0.0
    %94 = vmatprep.subr.mxu0 0.0
    %95 = vmatpush1.msra.mxu0 0.0
    %96 = vmatprep.subr.mxu0 0.0
    %97 = vmatpush1.msra.mxu0 0.0
    %98 = vmatprep.subr.mxu0 0.0
    %99 = vmatpush1.msra.mxu0 0.0
    %100 = vmatprep.subr.mxu0 0.0
    %101 = vmatpush1.msra.mxu0 0.0
    %102 = vmatprep.subr.mxu0 0.0
    %103 = vmatpush1.msra.mxu0 0.0
    %104 = vmatprep.subr.mxu0 0.0
    %105 = vmatpush1.msra.mxu0 0.0
    %106 = vmatprep.subr.mxu0 0.0
    %107 = vmatpush1.msra.mxu0 0.0
    %108 = vmatprep.subr.mxu0 0.0
    %109 = vmatpush1.msra.mxu0 0.0
    %110 = vmatprep.subr.mxu0 0.0
    %111 = vmatpush1.msra.mxu0 0.0
    %112 = vmatprep.mubr.f32.mxu0 0.0
    %113 = vmatmul.mubr.f32.gmra.mrb[0].mxu0 %v46
    %v114 = vpop.f32.mrb[0].mxu0
    %v115 = vadd.f32 %v42, %v114
    %v116 = vpop.f32.mrb[0].mxu0
    %117 = vdwg.mxu0
    %v118 = vxor.u32 %v115, 2147483648
    %v119 = vmul.f32 %v118, 1.442695
    %v120 = vpow.pop %v119
    %v121 = vadd.f32 %v120, 1.0
    %v122 = vrcp.pop %v121
    %v123 = vmul.f32 1.0, %v122
    %v124 = vld [vmem:[#allocation2] sm:$0xff]
    %v125 = vld [vmem:[#allocation2 + $0x8] sm:$0xff]
    %v126 = vld [vmem:[#allocation2 + $0x10] sm:$0xff]
    %v127 = vld [vmem:[#allocation2 + $0x18] sm:$0xff]
    %v128 = vld [vmem:[#allocation2 + $0x20] sm:$0xff]
    %v129 = vld [vmem:[#allocation2 + $0x28] sm:$0xff]
    %v130 = vld [vmem:[#allocation2 + $0x30] sm:$0xff]
    %v131 = vld [vmem:[#allocation2 + $0x38] sm:$0xff]
    %v132 = vld [vmem:[#allocation2 + $0x40] sm:$0xff]
    %v133 = vld [vmem:[#allocation2 + $0x48] sm:$0xff]
    %v134 = vld [vmem:[#allocation2 + $0x50] sm:$0xff]
    %v135 = vld [vmem:[#allocation2 + $0x58] sm:$0xff]
    %v136 = vld [vmem:[#allocation2 + $0x60] sm:$0xff]
    %v137 = vld [vmem:[#allocation2 + $0x68] sm:$0xff]
    %v138 = vld [vmem:[#allocation2 + $0x70] sm:$0xff]
    %v139 = vld [vmem:[#allocation2 + $0x78] sm:$0xff]
    %v140 = vld [vmem:[#allocation2 + $0x80] sm:$0xff]
    %v141 = vld [vmem:[#allocation2 + $0x88] sm:$0xff]
    %v142 = vld [vmem:[#allocation2 + $0x90] sm:$0xff]
    %v143 = vld [vmem:[#allocation2 + $0x98] sm:$0xff]
    %v144 = vld [vmem:[#allocation2 + $0xa0] sm:$0xff]
    %v145 = vld [vmem:[#allocation2 + $0xa8] sm:$0xff]
    %v146 = vld [vmem:[#allocation2 + $0xb0] sm:$0xff]
    %v147 = vld [vmem:[#allocation2 + $0xb8] sm:$0xff]
    %vm148 = vcmask 64512
    %v150 = vsel %vm148, %v123, 0
    %152 = vmatprep.subr.mxu0 %v125
    %153 = vmatpush1.msra.mxu0 %v124
    %154 = vmatprep.subr.mxu0 0.0
    %155 = vmatpush1.msra.mxu0 0.0
    %156 = vmatprep.subr.mxu0 0.0
    %157 = vmatpush1.msra.mxu0 0.0
    %158 = vmatprep.subr.mxu0 0.0
    %159 = vmatpush1.msra.mxu0 0.0
    %160 = vmatprep.subr.mxu0 0.0
    %161 = vmatpush1.msra.mxu0 0.0
    %162 = vmatprep.subr.mxu0 0.0
    %163 = vmatpush1.msra.mxu0 0.0
    %164 = vmatprep.subr.mxu0 0.0
    %165 = vmatpush1.msra.mxu0 0.0
    %166 = vmatprep.subr.mxu0 0.0
    %167 = vmatpush1.msra.mxu0 0.0
    %168 = vmatprep.subr.mxu0 0.0
    %169 = vmatpush1.msra.mxu0 0.0
    %170 = vmatprep.subr.mxu0 0.0
    %171 = vmatpush1.msra.mxu0 0.0
    %172 = vmatprep.subr.mxu0 0.0
    %173 = vmatpush1.msra.mxu0 0.0
    %174 = vmatprep.subr.mxu0 0.0
    %175 = vmatpush1.msra.mxu0 0.0
    %176 = vmatprep.subr.mxu0 0.0
    %177 = vmatpush1.msra.mxu0 0.0
    %178 = vmatprep.subr.mxu0 0.0
    %179 = vmatpush1.msra.mxu0 0.0
    %180 = vmatprep.subr.mxu0 0.0
    %181 = vmatpush1.msra.mxu0 0.0
    %182 = vmatprep.subr.mxu0 0.0
    %183 = vmatpush1.msra.mxu0 0.0
    %184 = vmatprep.subr.mxu0 0.0
    %185 = vmatpush1.msra.mxu0 0.0
    %186 = vmatprep.subr.mxu0 0.0
    %187 = vmatpush1.msra.mxu0 0.0
    %188 = vmatprep.subr.mxu0 0.0
    %189 = vmatpush1.msra.mxu0 0.0
    %190 = vmatprep.subr.mxu0 0.0
    %191 = vmatpush1.msra.mxu0 0.0
    %192 = vmatprep.subr.mxu0 0.0
    %193 = vmatpush1.msra.mxu0 0.0
    %194 = vmatprep.subr.mxu0 0.0
    %195 = vmatpush1.msra.mxu0 0.0
    %196 = vmatprep.subr.mxu0 0.0
    %197 = vmatpush1.msra.mxu0 0.0
    %198 = vmatprep.subr.mxu0 0.0
    %199 = vmatpush1.msra.mxu0 0.0
    %200 = vmatprep.subr.mxu0 0.0
    %201 = vmatpush1.msra.mxu0 0.0
    %202 = vmatprep.subr.mxu0 0.0
    %203 = vmatpush1.msra.mxu0 0.0
    %204 = vmatprep.subr.mxu0 0.0
    %205 = vmatpush1.msra.mxu0 0.0
    %206 = vmatprep.subr.mxu0 0.0
    %207 = vmatpush1.msra.mxu0 0.0
    %208 = vmatprep.subr.mxu0 0.0
    %209 = vmatpush1.msra.mxu0 0.0
    %210 = vmatprep.subr.mxu0 0.0
    %211 = vmatpush1.msra.mxu0 0.0
    %212 = vmatprep.subr.mxu0 0.0
    %213 = vmatpush1.msra.mxu0 0.0
    %214 = vmatprep.subr.mxu0 0.0
    %215 = vmatpush1.msra.mxu0 0.0
    %216 = vmatprep.mubr.f32.mxu0 0.0
    %217 = vmatmul.mubr.f32.gmra.mrb[0].mxu0 %v150
    %v218 = vpop.f32.mrb[0].mxu0
    %v219 = vadd.f32 0.0, %v218
    %v220 = vpop.f32.mrb[0].mxu0
    %v221 = vadd.f32 0.0, %v220
    %222 = vdwg.mxu0
    %223 = vmatprep.subr.mxu0 %v127
    %224 = vmatpush1.msra.mxu0 %v126
    %225 = vmatprep.subr.mxu0 0.0
    %226 = vmatpush1.msra.mxu0 0.0
    %227 = vmatprep.subr.mxu0 0.0
    %228 = vmatpush1.msra.mxu0 0.0
    %229 = vmatprep.subr.mxu0 0.0
    %230 = vmatpush1.msra.mxu0 0.0
    %231 = vmatprep.subr.mxu0 0.0
    %232 = vmatpush1.msra.mxu0 0.0
    %233 = vmatprep.subr.mxu0 0.0
    %234 = vmatpush1.msra.mxu0 0.0
    %235 = vmatprep.subr.mxu0 0.0
    %236 = vmatpush1.msra.mxu0 0.0
    %237 = vmatprep.subr.mxu0 0.0
    %238 = vmatpush1.msra.mxu0 0.0
    %239 = vmatprep.subr.mxu0 0.0
    %240 = vmatpush1.msra.mxu0 0.0
    %241 = vmatprep.subr.mxu0 0.0
    %242 = vmatpush1.msra.mxu0 0.0
    %243 = vmatprep.subr.mxu0 0.0
    %244 = vmatpush1.msra.mxu0 0.0
    %245 = vmatprep.subr.mxu0 0.0
    %246 = vmatpush1.msra.mxu0 0.0
    %247 = vmatprep.subr.mxu0 0.0
    %248 = vmatpush1.msra.mxu0 0.0
    %249 = vmatprep.subr.mxu0 0.0
    %250 = vmatpush1.msra.mxu0 0.0
    %251 = vmatprep.subr.mxu0 0.0
    %252 = vmatpush1.msra.mxu0 0.0
    %253 = vmatprep.subr.mxu0 0.0
    %254 = vmatpush1.msra.mxu0 0.0
    %255 = vmatprep.subr.mxu0 0.0
    %256 = vmatpush1.msra.mxu0 0.0
    %257 = vmatprep.subr.mxu0 0.0
    %258 = vmatpush1.msra.mxu0 0.0
    %259 = vmatprep.subr.mxu0 0.0
    %260 = vmatpush1.msra.mxu0 0.0
    %261 = vmatprep.subr.mxu0 0.0
    %262 = vmatpush1.msra.mxu0 0.0
    %263 = vmatprep.subr.mxu0 0.0
    %264 = vmatpush1.msra.mxu0 0.0
    %265 = vmatprep.subr.mxu0 0.0
    %266 = vmatpush1.msra.mxu0 0.0
    %267 = vmatprep.subr.mxu0 0.0
    %268 = vmatpush1.msra.mxu0 0.0
    %269 = vmatprep.subr.mxu0 0.0
    %270 = vmatpush1.msra.mxu0 0.0
    %271 = vmatprep.subr.mxu0 0.0
    %272 = vmatpush1.msra.mxu0 0.0
    %273 = vmatprep.subr.mxu0 0.0
    %274 = vmatpush1.msra.mxu0 0.0
    %275 = vmatprep.subr.mxu0 0.0
    %276 = vmatpush1.msra.mxu0 0.0
    %277 = vmatprep.subr.mxu0 0.0
    %278 = vmatpush1.msra.mxu0 0.0
    %279 = vmatprep.subr.mxu0 0.0
    %280 = vmatpush1.msra.mxu0 0.0
    %281 = vmatprep.subr.mxu0 0.0
    %282 = vmatpush1.msra.mxu0 0.0
    %283 = vmatprep.subr.mxu0 0.0
    %284 = vmatpush1.msra.mxu0 0.0
    %285 = vmatprep.subr.mxu0 0.0
    %286 = vmatpush1.msra.mxu0 0.0
    %287 = vmatprep.mubr.f32.mxu0 0.0
    %288 = vmatmul.mubr.f32.gmra.mrb[0].mxu0 %v150
    %v289 = vpop.f32.mrb[0].mxu0
    %v290 = vadd.f32 0.0, %v289
    %v291 = vpop.f32.mrb[0].mxu0
    %v292 = vadd.f32 0.0, %v291
    %293 = vdwg.mxu0
    %294 = vmatprep.subr.mxu0 %v129
    %295 = vmatpush1.msra.mxu0 %v128
    %296 = vmatprep.subr.mxu0 0.0
    %297 = vmatpush1.msra.mxu0 0.0
    %298 = vmatprep.subr.mxu0 0.0
    %299 = vmatpush1.msra.mxu0 0.0
    %300 = vmatprep.subr.mxu0 0.0
    %301 = vmatpush1.msra.mxu0 0.0
    %302 = vmatprep.subr.mxu0 0.0
    %303 = vmatpush1.msra.mxu0 0.0
    %304 = vmatprep.subr.mxu0 0.0
    %305 = vmatpush1.msra.mxu0 0.0
    %306 = vmatprep.subr.mxu0 0.0
    %307 = vmatpush1.msra.mxu0 0.0
    %308 = vmatprep.subr.mxu0 0.0
    %309 = vmatpush1.msra.mxu0 0.0
    %310 = vmatprep.subr.mxu0 0.0
    %311 = vmatpush1.msra.mxu0 0.0
    %312 = vmatprep.subr.mxu0 0.0
    %313 = vmatpush1.msra.mxu0 0.0
    %314 = vmatprep.subr.mxu0 0.0
    %315 = vmatpush1.msra.mxu0 0.0
    %316 = vmatprep.subr.mxu0 0.0
    %317 = vmatpush1.msra.mxu0 0.0
    %318 = vmatprep.subr.mxu0 0.0
    %319 = vmatpush1.msra.mxu0 0.0
    %320 = vmatprep.subr.mxu0 0.0
    %321 = vmatpush1.msra.mxu0 0.0
    %322 = vmatprep.subr.mxu0 0.0
    %323 = vmatpush1.msra.mxu0 0.0
    %324 = vmatprep.subr.mxu0 0.0
    %325 = vmatpush1.msra.mxu0 0.0
    %326 = vmatprep.subr.mxu0 0.0
    %327 = vmatpush1.msra.mxu0 0.0
    %328 = vmatprep.subr.mxu0 0.0
    %329 = vmatpush1.msra.mxu0 0.0
    %330 = vmatprep.subr.mxu0 0.0
    %331 = vmatpush1.msra.mxu0 0.0
    %332 = vmatprep.subr.mxu0 0.0
    %333 = vmatpush1.msra.mxu0 0.0
    %334 = vmatprep.subr.mxu0 0.0
    %335 = vmatpush1.msra.mxu0 0.0
    %336 = vmatprep.subr.mxu0 0.0
    %337 = vmatpush1.msra.mxu0 0.0
    %338 = vmatprep.subr.mxu0 0.0
    %339 = vmatpush1.msra.mxu0 0.0
    %340 = vmatprep.subr.mxu0 0.0
    %341 = vmatpush1.msra.mxu0 0.0
    %342 = vmatprep.subr.mxu0 0.0
    %343 = vmatpush1.msra.mxu0 0.0
    %344 = vmatprep.subr.mxu0 0.0
    %345 = vmatpush1.msra.mxu0 0.0
    %346 = vmatprep.subr.mxu0 0.0
    %347 = vmatpush1.msra.mxu0 0.0
    %348 = vmatprep.subr.mxu0 0.0
    %349 = vmatpush1.msra.mxu0 0.0
    %350 = vmatprep.subr.mxu0 0.0
    %351 = vmatpush1.msra.mxu0 0.0
    %352 = vmatprep.subr.mxu0 0.0
    %353 = vmatpush1.msra.mxu0 0.0
    %354 = vmatprep.subr.mxu0 0.0
    %355 = vmatpush1.msra.mxu0 0.0
    %356 = vmatprep.subr.mxu0 0.0
    %357 = vmatpush1.msra.mxu0 0.0
    %358 = vmatprep.mubr.f32.mxu0 0.0
    %359 = vmatmul.mubr.f32.gmra.mrb[0].mxu0 %v150
    %v360 = vpop.f32.mrb[0].mxu0
    %v361 = vadd.f32 0.0, %v360
    %v362 = vpop.f32.mrb[0].mxu0
    %v363 = vadd.f32 0.0, %v362
    %364 = vdwg.mxu0
    %365 = vmatprep.subr.mxu0 %v131
    %366 = vmatpush1.msra.mxu0 %v130
    %367 = vmatprep.subr.mxu0 0.0
    %368 = vmatpush1.msra.mxu0 0.0
    %369 = vmatprep.subr.mxu0 0.0
    %370 = vmatpush1.msra.mxu0 0.0
    %371 = vmatprep.subr.mxu0 0.0
    %372 = vmatpush1.msra.mxu0 0.0
    %373 = vmatprep.subr.mxu0 0.0
    %374 = vmatpush1.msra.mxu0 0.0
    %375 = vmatprep.subr.mxu0 0.0
    %376 = vmatpush1.msra.mxu0 0.0
    %377 = vmatprep.subr.mxu0 0.0
    %378 = vmatpush1.msra.mxu0 0.0
    %379 = vmatprep.subr.mxu0 0.0
    %380 = vmatpush1.msra.mxu0 0.0
    %381 = vmatprep.subr.mxu0 0.0
    %382 = vmatpush1.msra.mxu0 0.0
    %383 = vmatprep.subr.mxu0 0.0
    %384 = vmatpush1.msra.mxu0 0.0
    %385 = vmatprep.subr.mxu0 0.0
    %386 = vmatpush1.msra.mxu0 0.0
    %387 = vmatprep.subr.mxu0 0.0
    %388 = vmatpush1.msra.mxu0 0.0
    %389 = vmatprep.subr.mxu0 0.0
    %390 = vmatpush1.msra.mxu0 0.0
    %391 = vmatprep.subr.mxu0 0.0
    %392 = vmatpush1.msra.mxu0 0.0
    %393 = vmatprep.subr.mxu0 0.0
    %394 = vmatpush1.msra.mxu0 0.0
    %395 = vmatprep.subr.mxu0 0.0
    %396 = vmatpush1.msra.mxu0 0.0
    %397 = vmatprep.subr.mxu0 0.0
    %398 = vmatpush1.msra.mxu0 0.0
    %399 = vmatprep.subr.mxu0 0.0
    %400 = vmatpush1.msra.mxu0 0.0
    %401 = vmatprep.subr.mxu0 0.0
    %402 = vmatpush1.msra.mxu0 0.0
    %403 = vmatprep.subr.mxu0 0.0
    %404 = vmatpush1.msra.mxu0 0.0
    %405 = vmatprep.subr.mxu0 0.0
    %406 = vmatpush1.msra.mxu0 0.0
    %407 = vmatprep.subr.mxu0 0.0
    %408 = vmatpush1.msra.mxu0 0.0
    %409 = vmatprep.subr.mxu0 0.0
    %410 = vmatpush1.msra.mxu0 0.0
    %411 = vmatprep.subr.mxu0 0.0
    %412 = vmatpush1.msra.mxu0 0.0
    %413 = vmatprep.subr.mxu0 0.0
    %414 = vmatpush1.msra.mxu0 0.0
    %415 = vmatprep.subr.mxu0 0.0
    %416 = vmatpush1.msra.mxu0 0.0
    %417 = vmatprep.subr.mxu0 0.0
    %418 = vmatpush1.msra.mxu0 0.0
    %419 = vmatprep.subr.mxu0 0.0
    %420 = vmatpush1.msra.mxu0 0.0
    %421 = vmatprep.subr.mxu0 0.0
    %422 = vmatpush1.msra.mxu0 0.0
    %423 = vmatprep.subr.mxu0 0.0
    %424 = vmatpush1.msra.mxu0 0.0
    %425 = vmatprep.subr.mxu0 0.0
    %426 = vmatpush1.msra.mxu0 0.0
    %427 = vmatprep.subr.mxu0 0.0
    %428 = vmatpush1.msra.mxu0 0.0
    %429 = vmatprep.mubr.f32.mxu0 0.0
    %430 = vmatmul.mubr.f32.gmra.mrb[0].mxu0 %v150
    %v431 = vpop.f32.mrb[0].mxu0
    %v432 = vadd.f32 0.0, %v431
    %v433 = vpop.f32.mrb[0].mxu0
    %v434 = vadd.f32 0.0, %v433
    %435 = vdwg.mxu0
    %436 = vmatprep.subr.mxu0 %v133
    %437 = vmatpush1.msra.mxu0 %v132
    %438 = vmatprep.subr.mxu0 0.0
    %439 = vmatpush1.msra.mxu0 0.0
    %440 = vmatprep.subr.mxu0 0.0
    %441 = vmatpush1.msra.mxu0 0.0
    %442 = vmatprep.subr.mxu0 0.0
    %443 = vmatpush1.msra.mxu0 0.0
    %444 = vmatprep.subr.mxu0 0.0
    %445 = vmatpush1.msra.mxu0 0.0
    %446 = vmatprep.subr.mxu0 0.0
    %447 = vmatpush1.msra.mxu0 0.0
    %448 = vmatprep.subr.mxu0 0.0
    %449 = vmatpush1.msra.mxu0 0.0
    %450 = vmatprep.subr.mxu0 0.0
    %451 = vmatpush1.msra.mxu0 0.0
    %452 = vmatprep.subr.mxu0 0.0
    %453 = vmatpush1.msra.mxu0 0.0
    %454 = vmatprep.subr.mxu0 0.0
    %455 = vmatpush1.msra.mxu0 0.0
    %456 = vmatprep.subr.mxu0 0.0
    %457 = vmatpush1.msra.mxu0 0.0
    %458 = vmatprep.subr.mxu0 0.0
    %459 = vmatpush1.msra.mxu0 0.0
    %460 = vmatprep.subr.mxu0 0.0
    %461 = vmatpush1.msra.mxu0 0.0
    %462 = vmatprep.subr.mxu0 0.0
    %463 = vmatpush1.msra.mxu0 0.0
    %464 = vmatprep.subr.mxu0 0.0
    %465 = vmatpush1.msra.mxu0 0.0
    %466 = vmatprep.subr.mxu0 0.0
    %467 = vmatpush1.msra.mxu0 0.0
    %468 = vmatprep.subr.mxu0 0.0
    %469 = vmatpush1.msra.mxu0 0.0
    %470 = vmatprep.subr.mxu0 0.0
    %471 = vmatpush1.msra.mxu0 0.0
    %472 = vmatprep.subr.mxu0 0.0
    %473 = vmatpush1.msra.mxu0 0.0
    %474 = vmatprep.subr.mxu0 0.0
    %475 = vmatpush1.msra.mxu0 0.0
    %476 = vmatprep.subr.mxu0 0.0
    %477 = vmatpush1.msra.mxu0 0.0
    %478 = vmatprep.subr.mxu0 0.0
    %479 = vmatpush1.msra.mxu0 0.0
    %480 = vmatprep.subr.mxu0 0.0
    %481 = vmatpush1.msra.mxu0 0.0
    %482 = vmatprep.subr.mxu0 0.0
    %483 = vmatpush1.msra.mxu0 0.0
    %484 = vmatprep.subr.mxu0 0.0
    %485 = vmatpush1.msra.mxu0 0.0
    %486 = vmatprep.subr.mxu0 0.0
    %487 = vmatpush1.msra.mxu0 0.0
    %488 = vmatprep.subr.mxu0 0.0
    %489 = vmatpush1.msra.mxu0 0.0
    %490 = vmatprep.subr.mxu0 0.0
    %491 = vmatpush1.msra.mxu0 0.0
    %492 = vmatprep.subr.mxu0 0.0
    %493 = vmatpush1.msra.mxu0 0.0
    %494 = vmatprep.subr.mxu0 0.0
    %495 = vmatpush1.msra.mxu0 0.0
    %496 = vmatprep.subr.mxu0 0.0
    %497 = vmatpush1.msra.mxu0 0.0
    %498 = vmatprep.subr.mxu0 0.0
    %499 = vmatpush1.msra.mxu0 0.0
    %500 = vmatprep.mubr.f32.mxu0 0.0
    %501 = vmatmul.mubr.f32.gmra.mrb[0].mxu0 %v150
    %v502 = vpop.f32.mrb[0].mxu0
    %v503 = vadd.f32 0.0, %v502
    %v504 = vpop.f32.mrb[0].mxu0
    %v505 = vadd.f32 0.0, %v504
    %506 = vdwg.mxu0
    %507 = vmatprep.subr.mxu0 %v135
    %508 = vmatpush1.msra.mxu0 %v134
    %509 = vmatprep.subr.mxu0 0.0
    %510 = vmatpush1.msra.mxu0 0.0
    %511 = vmatprep.subr.mxu0 0.0
    %512 = vmatpush1.msra.mxu0 0.0
    %513 = vmatprep.subr.mxu0 0.0
    %514 = vmatpush1.msra.mxu0 0.0
    %515 = vmatprep.subr.mxu0 0.0
    %516 = vmatpush1.msra.mxu0 0.0
    %517 = vmatprep.subr.mxu0 0.0
    %518 = vmatpush1.msra.mxu0 0.0
    %519 = vmatprep.subr.mxu0 0.0
    %520 = vmatpush1.msra.mxu0 0.0
    %521 = vmatprep.subr.mxu0 0.0
    %522 = vmatpush1.msra.mxu0 0.0
    %523 = vmatprep.subr.mxu0 0.0
    %524 = vmatpush1.msra.mxu0 0.0
    %525 = vmatprep.subr.mxu0 0.0
    %526 = vmatpush1.msra.mxu0 0.0
    %527 = vmatprep.subr.mxu0 0.0
    %528 = vmatpush1.msra.mxu0 0.0
    %529 = vmatprep.subr.mxu0 0.0
    %530 = vmatpush1.msra.mxu0 0.0
    %531 = vmatprep.subr.mxu0 0.0
    %532 = vmatpush1.msra.mxu0 0.0
    %533 = vmatprep.subr.mxu0 0.0
    %534 = vmatpush1.msra.mxu0 0.0
    %535 = vmatprep.subr.mxu0 0.0
    %536 = vmatpush1.msra.mxu0 0.0
    %537 = vmatprep.subr.mxu0 0.0
    %538 = vmatpush1.msra.mxu0 0.0
    %539 = vmatprep.subr.mxu0 0.0
    %540 = vmatpush1.msra.mxu0 0.0
    %541 = vmatprep.subr.mxu0 0.0
    %542 = vmatpush1.msra.mxu0 0.0
    %543 = vmatprep.subr.mxu0 0.0
    %544 = vmatpush1.msra.mxu0 0.0
    %545 = vmatprep.subr.mxu0 0.0
    %546 = vmatpush1.msra.mxu0 0.0
    %547 = vmatprep.subr.mxu0 0.0
    %548 = vmatpush1.msra.mxu0 0.0
    %549 = vmatprep.subr.mxu0 0.0
    %550 = vmatpush1.msra.mxu0 0.0
    %551 = vmatprep.subr.mxu0 0.0
    %552 = vmatpush1.msra.mxu0 0.0
    %553 = vmatprep.subr.mxu0 0.0
    %554 = vmatpush1.msra.mxu0 0.0
    %555 = vmatprep.subr.mxu0 0.0
    %556 = vmatpush1.msra.mxu0 0.0
    %557 = vmatprep.subr.mxu0 0.0
    %558 = vmatpush1.msra.mxu0 0.0
    %559 = vmatprep.subr.mxu0 0.0
    %560 = vmatpush1.msra.mxu0 0.0
    %561 = vmatprep.subr.mxu0 0.0
    %562 = vmatpush1.msra.mxu0 0.0
    %563 = vmatprep.subr.mxu0 0.0
    %564 = vmatpush1.msra.mxu0 0.0
    %565 = vmatprep.subr.mxu0 0.0
    %566 = vmatpush1.msra.mxu0 0.0
    %567 = vmatprep.subr.mxu0 0.0
    %568 = vmatpush1.msra.mxu0 0.0
    %569 = vmatprep.subr.mxu0 0.0
    %570 = vmatpush1.msra.mxu0 0.0
    %571 = vmatprep.mubr.f32.mxu0 0.0
    %572 = vmatmul.mubr.f32.gmra.mrb[0].mxu0 %v150
    %v573 = vpop.f32.mrb[0].mxu0
    %v574 = vadd.f32 0.0, %v573
    %v575 = vpop.f32.mrb[0].mxu0
    %v576 = vadd.f32 0.0, %v575
    %577 = vdwg.mxu0
    %578 = vmatprep.subr.mxu0 %v137
    %579 = vmatpush1.msra.mxu0 %v136
    %580 = vmatprep.subr.mxu0 0.0
    %581 = vmatpush1.msra.mxu0 0.0
    %582 = vmatprep.subr.mxu0 0.0
    %583 = vmatpush1.msra.mxu0 0.0
    %584 = vmatprep.subr.mxu0 0.0
    %585 = vmatpush1.msra.mxu0 0.0
    %586 = vmatprep.subr.mxu0 0.0
    %587 = vmatpush1.msra.mxu0 0.0
    %588 = vmatprep.subr.mxu0 0.0
    %589 = vmatpush1.msra.mxu0 0.0
    %590 = vmatprep.subr.mxu0 0.0
    %591 = vmatpush1.msra.mxu0 0.0
    %592 = vmatprep.subr.mxu0 0.0
    %593 = vmatpush1.msra.mxu0 0.0
    %594 = vmatprep.subr.mxu0 0.0
    %595 = vmatpush1.msra.mxu0 0.0
    %596 = vmatprep.subr.mxu0 0.0
    %597 = vmatpush1.msra.mxu0 0.0
    %598 = vmatprep.subr.mxu0 0.0
    %599 = vmatpush1.msra.mxu0 0.0
    %600 = vmatprep.subr.mxu0 0.0
    %601 = vmatpush1.msra.mxu0 0.0
    %602 = vmatprep.subr.mxu0 0.0
    %603 = vmatpush1.msra.mxu0 0.0
    %604 = vmatprep.subr.mxu0 0.0
    %605 = vmatpush1.msra.mxu0 0.0
    %606 = vmatprep.subr.mxu0 0.0
    %607 = vmatpush1.msra.mxu0 0.0
    %608 = vmatprep.subr.mxu0 0.0
    %609 = vmatpush1.msra.mxu0 0.0
    %610 = vmatprep.subr.mxu0 0.0
    %611 = vmatpush1.msra.mxu0 0.0
    %612 = vmatprep.subr.mxu0 0.0
    %613 = vmatpush1.msra.mxu0 0.0
    %614 = vmatprep.subr.mxu0 0.0
    %615 = vmatpush1.msra.mxu0 0.0
    %616 = vmatprep.subr.mxu0 0.0
    %617 = vmatpush1.msra.mxu0 0.0
    %618 = vmatprep.subr.mxu0 0.0
    %619 = vmatpush1.msra.mxu0 0.0
    %620 = vmatprep.subr.mxu0 0.0
    %621 = vmatpush1.msra.mxu0 0.0
    %622 = vmatprep.subr.mxu0 0.0
    %623 = vmatpush1.msra.mxu0 0.0
    %624 = vmatprep.subr.mxu0 0.0
    %625 = vmatpush1.msra.mxu0 0.0
    %626 = vmatprep.subr.mxu0 0.0
    %627 = vmatpush1.msra.mxu0 0.0
    %628 = vmatprep.subr.mxu0 0.0
    %629 = vmatpush1.msra.mxu0 0.0
    %630 = vmatprep.subr.mxu0 0.0
    %631 = vmatpush1.msra.mxu0 0.0
    %632 = vmatprep.subr.mxu0 0.0
    %633 = vmatpush1.msra.mxu0 0.0
    %634 = vmatprep.subr.mxu0 0.0
    %635 = vmatpush1.msra.mxu0 0.0
    %636 = vmatprep.subr.mxu0 0.0
    %637 = vmatpush1.msra.mxu0 0.0
    %638 = vmatprep.subr.mxu0 0.0
    %639 = vmatpush1.msra.mxu0 0.0
    %640 = vmatprep.subr.mxu0 0.0
    %641 = vmatpush1.msra.mxu0 0.0
    %642 = vmatprep.mubr.f32.mxu0 0.0
    %643 = vmatmul.mubr.f32.gmra.mrb[0].mxu0 %v150
    %v644 = vpop.f32.mrb[0].mxu0
    %v645 = vadd.f32 0.0, %v644
    %v646 = vpop.f32.mrb[0].mxu0
    %v647 = vadd.f32 0.0, %v646
    %648 = vdwg.mxu0
    %649 = vmatprep.subr.mxu0 %v139
    %650 = vmatpush1.msra.mxu0 %v138
    %651 = vmatprep.subr.mxu0 0.0
    %652 = vmatpush1.msra.mxu0 0.0
    %653 = vmatprep.subr.mxu0 0.0
    %654 = vmatpush1.msra.mxu0 0.0
    %655 = vmatprep.subr.mxu0 0.0
    %656 = vmatpush1.msra.mxu0 0.0
    %657 = vmatprep.subr.mxu0 0.0
    %658 = vmatpush1.msra.mxu0 0.0
    %659 = vmatprep.subr.mxu0 0.0
    %660 = vmatpush1.msra.mxu0 0.0
    %661 = vmatprep.subr.mxu0 0.0
    %662 = vmatpush1.msra.mxu0 0.0
    %663 = vmatprep.subr.mxu0 0.0
    %664 = vmatpush1.msra.mxu0 0.0
    %665 = vmatprep.subr.mxu0 0.0
    %666 = vmatpush1.msra.mxu0 0.0
    %667 = vmatprep.subr.mxu0 0.0
    %668 = vmatpush1.msra.mxu0 0.0
    %669 = vmatprep.subr.mxu0 0.0
    %670 = vmatpush1.msra.mxu0 0.0
    %671 = vmatprep.subr.mxu0 0.0
    %672 = vmatpush1.msra.mxu0 0.0
    %673 = vmatprep.subr.mxu0 0.0
    %674 = vmatpush1.msra.mxu0 0.0
    %675 = vmatprep.subr.mxu0 0.0
    %676 = vmatpush1.msra.mxu0 0.0
    %677 = vmatprep.subr.mxu0 0.0
    %678 = vmatpush1.msra.mxu0 0.0
    %679 = vmatprep.subr.mxu0 0.0
    %680 = vmatpush1.msra.mxu0 0.0
    %681 = vmatprep.subr.mxu0 0.0
    %682 = vmatpush1.msra.mxu0 0.0
    %683 = vmatprep.subr.mxu0 0.0
    %684 = vmatpush1.msra.mxu0 0.0
    %685 = vmatprep.subr.mxu0 0.0
    %686 = vmatpush1.msra.mxu0 0.0
    %687 = vmatprep.subr.mxu0 0.0
    %688 = vmatpush1.msra.mxu0 0.0
    %689 = vmatprep.subr.mxu0 0.0
    %690 = vmatpush1.msra.mxu0 0.0
    %691 = vmatprep.subr.mxu0 0.0
    %692 = vmatpush1.msra.mxu0 0.0
    %693 = vmatprep.subr.mxu0 0.0
    %694 = vmatpush1.msra.mxu0 0.0
    %695 = vmatprep.subr.mxu0 0.0
    %696 = vmatpush1.msra.mxu0 0.0
    %697 = vmatprep.subr.mxu0 0.0
    %698 = vmatpush1.msra.mxu0 0.0
    %699 = vmatprep.subr.mxu0 0.0
    %700 = vmatpush1.msra.mxu0 0.0
    %701 = vmatprep.subr.mxu0 0.0
    %702 = vmatpush1.msra.mxu0 0.0
    %703 = vmatprep.subr.mxu0 0.0
    %704 = vmatpush1.msra.mxu0 0.0
    %705 = vmatprep.subr.mxu0 0.0
    %706 = vmatpush1.msra.mxu0 0.0
    %707 = vmatprep.subr.mxu0 0.0
    %708 = vmatpush1.msra.mxu0 0.0
    %709 = vmatprep.subr.mxu0 0.0
    %710 = vmatpush1.msra.mxu0 0.0
    %711 = vmatprep.subr.mxu0 0.0
    %712 = vmatpush1.msra.mxu0 0.0
    %713 = vmatprep.mubr.f32.mxu0 0.0
    %714 = vmatmul.mubr.f32.gmra.mrb[0].mxu0 %v150
    %v715 = vpop.f32.mrb[0].mxu0
    %v716 = vadd.f32 0.0, %v715
    %v717 = vpop.f32.mrb[0].mxu0
    %v718 = vadd.f32 0.0, %v717
    %719 = vdwg.mxu0
    %720 = vmatprep.subr.mxu0 %v141
    %721 = vmatpush1.msra.mxu0 %v140
    %722 = vmatprep.subr.mxu0 0.0
    %723 = vmatpush1.msra.mxu0 0.0
    %724 = vmatprep.subr.mxu0 0.0
    %725 = vmatpush1.msra.mxu0 0.0
    %726 = vmatprep.subr.mxu0 0.0
    %727 = vmatpush1.msra.mxu0 0.0
    %728 = vmatprep.subr.mxu0 0.0
    %729 = vmatpush1.msra.mxu0 0.0
    %730 = vmatprep.subr.mxu0 0.0
    %731 = vmatpush1.msra.mxu0 0.0
    %732 = vmatprep.subr.mxu0 0.0
    %733 = vmatpush1.msra.mxu0 0.0
    %734 = vmatprep.subr.mxu0 0.0
    %735 = vmatpush1.msra.mxu0 0.0
    %736 = vmatprep.subr.mxu0 0.0
    %737 = vmatpush1.msra.mxu0 0.0
    %738 = vmatprep.subr.mxu0 0.0
    %739 = vmatpush1.msra.mxu0 0.0
    %740 = vmatprep.subr.mxu0 0.0
    %741 = vmatpush1.msra.mxu0 0.0
    %742 = vmatprep.subr.mxu0 0.0
    %743 = vmatpush1.msra.mxu0 0.0
    %744 = vmatprep.subr.mxu0 0.0
    %745 = vmatpush1.msra.mxu0 0.0
    %746 = vmatprep.subr.mxu0 0.0
    %747 = vmatpush1.msra.mxu0 0.0
    %748 = vmatprep.subr.mxu0 0.0
    %749 = vmatpush1.msra.mxu0 0.0
    %750 = vmatprep.subr.mxu0 0.0
    %751 = vmatpush1.msra.mxu0 0.0
    %752 = vmatprep.subr.mxu0 0.0
    %753 = vmatpush1.msra.mxu0 0.0
    %754 = vmatprep.subr.mxu0 0.0
    %755 = vmatpush1.msra.mxu0 0.0
    %756 = vmatprep.subr.mxu0 0.0
    %757 = vmatpush1.msra.mxu0 0.0
    %758 = vmatprep.subr.mxu0 0.0
    %759 = vmatpush1.msra.mxu0 0.0
    %760 = vmatprep.subr.mxu0 0.0
    %761 = vmatpush1.msra.mxu0 0.0
    %762 = vmatprep.subr.mxu0 0.0
    %763 = vmatpush1.msra.mxu0 0.0
    %764 = vmatprep.subr.mxu0 0.0
    %765 = vmatpush1.msra.mxu0 0.0
    %766 = vmatprep.subr.mxu0 0.0
    %767 = vmatpush1.msra.mxu0 0.0
    %768 = vmatprep.subr.mxu0 0.0
    %769 = vmatpush1.msra.mxu0 0.0
    %770 = vmatprep.subr.mxu0 0.0
    %771 = vmatpush1.msra.mxu0 0.0
    %772 = vmatprep.subr.mxu0 0.0
    %773 = vmatpush1.msra.mxu0 0.0
    %774 = vmatprep.subr.mxu0 0.0
    %775 = vmatpush1.msra.mxu0 0.0
    %776 = vmatprep.subr.mxu0 0.0
    %777 = vmatpush1.msra.mxu0 0.0
    %778 = vmatprep.subr.mxu0 0.0
    %779 = vmatpush1.msra.mxu0 0.0
    %780 = vmatprep.subr.mxu0 0.0
    %781 = vmatpush1.msra.mxu0 0.0
    %782 = vmatprep.subr.mxu0 0.0
    %783 = vmatpush1.msra.mxu0 0.0
    %784 = vmatprep.mubr.f32.mxu0 0.0
    %785 = vmatmul.mubr.f32.gmra.mrb[0].mxu0 %v150
    %v786 = vpop.f32.mrb[0].mxu0
    %v787 = vadd.f32 0.0, %v786
    %v788 = vpop.f32.mrb[0].mxu0
    %v789 = vadd.f32 0.0, %v788
    %790 = vdwg.mxu0
    %791 = vmatprep.subr.mxu0 %v143
    %792 = vmatpush1.msra.mxu0 %v142
    %793 = vmatprep.subr.mxu0 0.0
    %794 = vmatpush1.msra.mxu0 0.0
    %795 = vmatprep.subr.mxu0 0.0
    %796 = vmatpush1.msra.mxu0 0.0
    %797 = vmatprep.subr.mxu0 0.0
    %798 = vmatpush1.msra.mxu0 0.0
    %799 = vmatprep.subr.mxu0 0.0
    %800 = vmatpush1.msra.mxu0 0.0
    %801 = vmatprep.subr.mxu0 0.0
    %802 = vmatpush1.msra.mxu0 0.0
    %803 = vmatprep.subr.mxu0 0.0
    %804 = vmatpush1.msra.mxu0 0.0
    %805 = vmatprep.subr.mxu0 0.0
    %806 = vmatpush1.msra.mxu0 0.0
    %807 = vmatprep.subr.mxu0 0.0
    %808 = vmatpush1.msra.mxu0 0.0
    %809 = vmatprep.subr.mxu0 0.0
    %810 = vmatpush1.msra.mxu0 0.0
    %811 = vmatprep.subr.mxu0 0.0
    %812 = vmatpush1.msra.mxu0 0.0
    %813 = vmatprep.subr.mxu0 0.0
    %814 = vmatpush1.msra.mxu0 0.0
    %815 = vmatprep.subr.mxu0 0.0
    %816 = vmatpush1.msra.mxu0 0.0
    %817 = vmatprep.subr.mxu0 0.0
    %818 = vmatpush1.msra.mxu0 0.0
    %819 = vmatprep.subr.mxu0 0.0
    %820 = vmatpush1.msra.mxu0 0.0
    %821 = vmatprep.subr.mxu0 0.0
    %822 = vmatpush1.msra.mxu0 0.0
    %823 = vmatprep.subr.mxu0 0.0
    %824 = vmatpush1.msra.mxu0 0.0
    %825 = vmatprep.subr.mxu0 0.0
    %826 = vmatpush1.msra.mxu0 0.0
    %827 = vmatprep.subr.mxu0 0.0
    %828 = vmatpush1.msra.mxu0 0.0
    %829 = vmatprep.subr.mxu0 0.0
    %830 = vmatpush1.msra.mxu0 0.0
    %831 = vmatprep.subr.mxu0 0.0
    %832 = vmatpush1.msra.mxu0 0.0
    %833 = vmatprep.subr.mxu0 0.0
    %834 = vmatpush1.msra.mxu0 0.0
    %835 = vmatprep.subr.mxu0 0.0
    %836 = vmatpush1.msra.mxu0 0.0
    %837 = vmatprep.subr.mxu0 0.0
    %838 = vmatpush1.msra.mxu0 0.0
    %839 = vmatprep.subr.mxu0 0.0
    %840 = vmatpush1.msra.mxu0 0.0
    %841 = vmatprep.subr.mxu0 0.0
    %842 = vmatpush1.msra.mxu0 0.0
    %843 = vmatprep.subr.mxu0 0.0
    %844 = vmatpush1.msra.mxu0 0.0
    %845 = vmatprep.subr.mxu0 0.0
    %846 = vmatpush1.msra.mxu0 0.0
    %847 = vmatprep.subr.mxu0 0.0
    %848 = vmatpush1.msra.mxu0 0.0
    %849 = vmatprep.subr.mxu0 0.0
    %850 = vmatpush1.msra.mxu0 0.0
    %851 = vmatprep.subr.mxu0 0.0
    %852 = vmatpush1.msra.mxu0 0.0
    %853 = vmatprep.subr.mxu0 0.0
    %854 = vmatpush1.msra.mxu0 0.0
    %855 = vmatprep.mubr.f32.mxu0 0.0
    %856 = vmatmul.mubr.f32.gmra.mrb[0].mxu0 %v150
    %v857 = vpop.f32.mrb[0].mxu0
    %v858 = vadd.f32 0.0, %v857
    %v859 = vpop.f32.mrb[0].mxu0
    %v860 = vadd.f32 0.0, %v859
    %861 = vdwg.mxu0
    %862 = vmatprep.subr.mxu0 %v145
    %863 = vmatpush1.msra.mxu0 %v144
    %864 = vmatprep.subr.mxu0 0.0
    %865 = vmatpush1.msra.mxu0 0.0
    %866 = vmatprep.subr.mxu0 0.0
    %867 = vmatpush1.msra.mxu0 0.0
    %868 = vmatprep.subr.mxu0 0.0
    %869 = vmatpush1.msra.mxu0 0.0
    %870 = vmatprep.subr.mxu0 0.0
    %871 = vmatpush1.msra.mxu0 0.0
    %872 = vmatprep.subr.mxu0 0.0
    %873 = vmatpush1.msra.mxu0 0.0
    %874 = vmatprep.subr.mxu0 0.0
    %875 = vmatpush1.msra.mxu0 0.0
    %876 = vmatprep.subr.mxu0 0.0
    %877 = vmatpush1.msra.mxu0 0.0
    %878 = vmatprep.subr.mxu0 0.0
    %879 = vmatpush1.msra.mxu0 0.0
    %880 = vmatprep.subr.mxu0 0.0
    %881 = vmatpush1.msra.mxu0 0.0
    %882 = vmatprep.subr.mxu0 0.0
    %883 = vmatpush1.msra.mxu0 0.0
    %884 = vmatprep.subr.mxu0 0.0
    %885 = vmatpush1.msra.mxu0 0.0
    %886 = vmatprep.subr.mxu0 0.0
    %887 = vmatpush1.msra.mxu0 0.0
    %888 = vmatprep.subr.mxu0 0.0
    %889 = vmatpush1.msra.mxu0 0.0
    %890 = vmatprep.subr.mxu0 0.0
    %891 = vmatpush1.msra.mxu0 0.0
    %892 = vmatprep.subr.mxu0 0.0
    %893 = vmatpush1.msra.mxu0 0.0
    %894 = vmatprep.subr.mxu0 0.0
    %895 = vmatpush1.msra.mxu0 0.0
    %896 = vmatprep.subr.mxu0 0.0
    %897 = vmatpush1.msra.mxu0 0.0
    %898 = vmatprep.subr.mxu0 0.0
    %899 = vmatpush1.msra.mxu0 0.0
    %900 = vmatprep.subr.mxu0 0.0
    %901 = vmatpush1.msra.mxu0 0.0
    %902 = vmatprep.subr.mxu0 0.0
    %903 = vmatpush1.msra.mxu0 0.0
    %904 = vmatprep.subr.mxu0 0.0
    %905 = vmatpush1.msra.mxu0 0.0
    %906 = vmatprep.subr.mxu0 0.0
    %907 = vmatpush1.msra.mxu0 0.0
    %908 = vmatprep.subr.mxu0 0.0
    %909 = vmatpush1.msra.mxu0 0.0
    %910 = vmatprep.subr.mxu0 0.0
    %911 = vmatpush1.msra.mxu0 0.0
    %912 = vmatprep.subr.mxu0 0.0
    %913 = vmatpush1.msra.mxu0 0.0
    %914 = vmatprep.subr.mxu0 0.0
    %915 = vmatpush1.msra.mxu0 0.0
    %916 = vmatprep.subr.mxu0 0.0
    %917 = vmatpush1.msra.mxu0 0.0
    %918 = vmatprep.subr.mxu0 0.0
    %919 = vmatpush1.msra.mxu0 0.0
    %920 = vmatprep.subr.mxu0 0.0
    %921 = vmatpush1.msra.mxu0 0.0
    %922 = vmatprep.subr.mxu0 0.0
    %923 = vmatpush1.msra.mxu0 0.0
    %924 = vmatprep.subr.mxu0 0.0
    %925 = vmatpush1.msra.mxu0 0.0
    %926 = vmatprep.mubr.f32.mxu0 0.0
    %927 = vmatmul.mubr.f32.gmra.mrb[0].mxu0 %v150
    %v928 = vpop.f32.mrb[0].mxu0
    %v929 = vadd.f32 0.0, %v928
    %v930 = vpop.f32.mrb[0].mxu0
    %v931 = vadd.f32 0.0, %v930
    %932 = vdwg.mxu0
    %933 = vmatprep.subr.mxu0 %v147
    %934 = vmatpush1.msra.mxu0 %v146
    %935 = vmatprep.subr.mxu0 0.0
    %936 = vmatpush1.msra.mxu0 0.0
    %937 = vmatprep.subr.mxu0 0.0
    %938 = vmatpush1.msra.mxu0 0.0
    %939 = vmatprep.subr.mxu0 0.0
    %940 = vmatpush1.msra.mxu0 0.0
    %941 = vmatprep.subr.mxu0 0.0
    %942 = vmatpush1.msra.mxu0 0.0
    %943 = vmatprep.subr.mxu0 0.0
    %944 = vmatpush1.msra.mxu0 0.0
    %945 = vmatprep.subr.mxu0 0.0
    %946 = vmatpush1.msra.mxu0 0.0
    %947 = vmatprep.subr.mxu0 0.0
    %948 = vmatpush1.msra.mxu0 0.0
    %949 = vmatprep.subr.mxu0 0.0
    %950 = vmatpush1.msra.mxu0 0.0
    %951 = vmatprep.subr.mxu0 0.0
    %952 = vmatpush1.msra.mxu0 0.0
    %953 = vmatprep.subr.mxu0 0.0
    %954 = vmatpush1.msra.mxu0 0.0
    %955 = vmatprep.subr.mxu0 0.0
    %956 = vmatpush1.msra.mxu0 0.0
    %957 = vmatprep.subr.mxu0 0.0
    %958 = vmatpush1.msra.mxu0 0.0
    %959 = vmatprep.subr.mxu0 0.0
    %960 = vmatpush1.msra.mxu0 0.0
    %961 = vmatprep.subr.mxu0 0.0
    %962 = vmatpush1.msra.mxu0 0.0
    %963 = vmatprep.subr.mxu0 0.0
    %964 = vmatpush1.msra.mxu0 0.0
    %965 = vmatprep.subr.mxu0 0.0
    %966 = vmatpush1.msra.mxu0 0.0
    %967 = vmatprep.subr.mxu0 0.0
    %968 = vmatpush1.msra.mxu0 0.0
    %969 = vmatprep.subr.mxu0 0.0
    %970 = vmatpush1.msra.mxu0 0.0
    %971 = vmatprep.subr.mxu0 0.0
    %972 = vmatpush1.msra.mxu0 0.0
    %973 = vmatprep.subr.mxu0 0.0
    %974 = vmatpush1.msra.mxu0 0.0
    %975 = vmatprep.subr.mxu0 0.0
    %976 = vmatpush1.msra.mxu0 0.0
    %977 = vmatprep.subr.mxu0 0.0
    %978 = vmatpush1.msra.mxu0 0.0
    %979 = vmatprep.subr.mxu0 0.0
    %980 = vmatpush1.msra.mxu0 0.0
    %981 = vmatprep.subr.mxu0 0.0
    %982 = vmatpush1.msra.mxu0 0.0
    %983 = vmatprep.subr.mxu0 0.0
    %984 = vmatpush1.msra.mxu0 0.0
    %985 = vmatprep.subr.mxu0 0.0
    %986 = vmatpush1.msra.mxu0 0.0
    %987 = vmatprep.subr.mxu0 0.0
    %988 = vmatpush1.msra.mxu0 0.0
    %989 = vmatprep.subr.mxu0 0.0
    %990 = vmatpush1.msra.mxu0 0.0
    %991 = vmatprep.subr.mxu0 0.0
    %992 = vmatpush1.msra.mxu0 0.0
    %993 = vmatprep.subr.mxu0 0.0
    %994 = vmatpush1.msra.mxu0 0.0
    %995 = vmatprep.subr.mxu0 0.0
    %996 = vmatpush1.msra.mxu0 0.0
    %997 = vmatprep.mubr.f32.mxu0 0.0
    %998 = vmatmul.mubr.f32.gmra.mrb[0].mxu0 %v150
    %v999 = vpop.f32.mrb[0].mxu0
    %v1000 = vadd.f32 0.0, %v999
    %v1001 = vpop.f32.mrb[0].mxu0
    %v1002 = vadd.f32 0.0, %v1001
    %1003 = vdwg.mxu0
    %1004 = vst [vmem:[#allocation5] sm:$0xff] %v219
    %1005 = vst [vmem:[#allocation5 + $0x8] sm:$0xff] %v221
    %1006 = vst [vmem:[#allocation5 + $0x10] sm:$0xff] %v290
    %1007 = vst [vmem:[#allocation5 + $0x18] sm:$0xff] %v292
    %1008 = vst [vmem:[#allocation5 + $0x20] sm:$0xff] %v361
    %1009 = vst [vmem:[#allocation5 + $0x28] sm:$0xff] %v363
    %1010 = vst [vmem:[#allocation5 + $0x30] sm:$0xff] %v432
    %1011 = vst [vmem:[#allocation5 + $0x38] sm:$0xff] %v434
    %1012 = vst [vmem:[#allocation5 + $0x40] sm:$0xff] %v503
    %1013 = vst [vmem:[#allocation5 + $0x48] sm:$0xff] %v505
    %1014 = vst [vmem:[#allocation5 + $0x50] sm:$0xff] %v574
    %1015 = vst [vmem:[#allocation5 + $0x58] sm:$0xff] %v576
    %1016 = vst [vmem:[#allocation5 + $0x60] sm:$0xff] %v645
    %1017 = vst [vmem:[#allocation5 + $0x68] sm:$0xff] %v647
    %1018 = vst [vmem:[#allocation5 + $0x70] sm:$0xff] %v716
    %1019 = vst [vmem:[#allocation5 + $0x78] sm:$0xff] %v718
    %1020 = vst [vmem:[#allocation5 + $0x80] sm:$0xff] %v787
    %1021 = vst [vmem:[#allocation5 + $0x88] sm:$0xff] %v789
    %1022 = vst [vmem:[#allocation5 + $0x90] sm:$0xff] %v858
    %1023 = vst [vmem:[#allocation5 + $0x98] sm:$0xff] %v860
    %1024 = vst [vmem:[#allocation5 + $0xa0] sm:$0xff] %v929
    %1025 = vst [vmem:[#allocation5 + $0xa8] sm:$0xff] %v931
    %1026 = vst [vmem:[#allocation5 + $0xb0] sm:$0xff] %v1000
    %1027 = vst [vmem:[#allocation5 + $0xb8] sm:$0xff] %v1002
    // Predicated region
    $region22: #{tpu_custom_call.1} parent=1 // pred_check
      _
    $region23: #{tpu_custom_call.1} parent=1 // pred_check_branch
      %1029 = sbr.rel (0) target = $region25
    $region24: #{tpu_custom_call.1} parent=1 // pred_region
      %s1031 = ssub.s32 3072, 3072
      %1032 = vsyncadd [#allocation4], %s1031
      %s1034 = sshll.u32 [#allocation5], 4
      %s1035 = int_to_ptr.vmem [resolvable:$true] %s1034
      %1037 = dma.vmem_to_hbm [thread:$0]  %s1035, 3072, %s4, [#allocation4]
    $region25: #{tpu_custom_call.1} parent=1 // pred_fallthru
      _
    // Predicated region
    $region26: #{tpu_custom_call.1} parent=1 // pred_check
      _
    $region27: #{tpu_custom_call.1} parent=1 // pred_check_branch
      %1039 = sbr.rel (0) target = $region29
    $region28: #{tpu_custom_call.1} parent=1 // pred_region
      %1040 = dma.done [#allocation4], 3072
    $region29: #{tpu_custom_call.1} parent=1 // pred_fallthru
      _
    %1041 = vsyncpa [#allocation3], 1
    %1042 = vsyncpa [#allocation4], 1

</llo_original>
